<compile_context>
chip_gen: v7x
topology: tpu7x:2x2x1
jax: 0.10.0
libtpu: 0.0.40
codegen_flags: <defaults>
</compile_context>

<pallas_src>
import jax
import jax.numpy as jnp
from jax import lax
from jax.experimental import pallas as pl
from jax.experimental.pallas import tpu as pltpu


HIDDEN = 100        # logical hidden width (matches the torch module)
LANE = 128          # TPU lane width   -> hidden dim / batch-on-lanes pad target
SUBLANE = 8         # TPU sublane width-> din / out_dim pad target
HIDDEN_PAD = 128    # zero-padded hidden width used inside the kernel


def _mlp_kernel(x_ref, w1_ref, b1_ref, w2_ref, b2_ref, w3_ref, b3_ref, o_ref):
    # x is f32 in HBM (tiny); cast to bf16 only for the MXU.
    x = x_ref[...].astype(jnp.bfloat16)                          # (TB, Din_pad)

    # layer 1: Linear + ReLU  (bf16 MXU, f32 accumulate, f32 epilogue)
    h1 = jnp.dot(x, w1_ref[...], preferred_element_type=jnp.float32) + b1_ref[...]
    h1 = jnp.maximum(h1, 0.0).astype(jnp.bfloat16)               # (TB, 128)

    # layer 2: Linear + ReLU
    h2 = jnp.dot(h1, w2_ref[...], preferred_element_type=jnp.float32) + b2_ref[...]
    h2 = jnp.maximum(h2, 0.0).astype(jnp.bfloat16)               # (TB, 128)

    # output layer, computed transposed:  out_T = W3 @ h2^T   (A @ B^T pattern)
    # w3_ref is (out_pad, 128) [torch (out_features, in_features) layout, padded]
    out_t = lax.dot_general(w3_ref[...], h2,
                            (((1,), (1,)), ((), ())),
                            preferred_element_type=jnp.float32)   # (out_pad, TB)
    o_ref[...] = (out_t + b3_ref[...]).astype(o_ref.dtype)        # lane-dense store


def _round_up(n, m):
    return ((n + m - 1) // m) * m


def _pad2d(a, rows, cols):
    return jnp.pad(a, ((0, rows - a.shape[0]), (0, cols - a.shape[1])))


def network_forward(x, params, *, batch_tile=2048):
    """Fused MLP forward pass as a single batch-tiled Pallas kernel."""
    w1, b1, w2, b2, w3, b3 = params
    batch, din = x.shape
    out_dim = w3.shape[1]

    din_pad = _round_up(max(din, SUBLANE), SUBLANE)       # aligned K for layer 1
    out_pad = _round_up(max(out_dim, SUBLANE), SUBLANE)   # sublane-aligned out rows

    # ---- batch tiling: batch sits on LANES of the output -> 128-multiples ----
    batch_tile = max(LANE, _round_up(batch_tile, LANE))
    b_pad = _round_up(max(batch, LANE), LANE)
    # cap tile at ceil(b_pad/2) so grid >= 2 when possible (v7x: 2 TensorCores)
    tb = min(batch_tile, _round_up(pl.cdiv(b_pad, 2), LANE))
    b_pad = _round_up(b_pad, tb)

    x_p = jnp.pad(x, ((0, b_pad - batch), (0, din_pad - din)))    # stays f32

    # ---- zero-pad params; weights -> bf16 (MXU-native), biases stay f32 ----
    bf16 = jnp.bfloat16
    w1p = _pad2d(w1, din_pad, HIDDEN_PAD).astype(bf16)            # (Din_pad, 128)
    b1p = _pad2d(b1, 1, HIDDEN_PAD)                               # (1, 128) f32
    w2p = _pad2d(w2, HIDDEN_PAD, HIDDEN_PAD).astype(bf16)         # (128, 128)
    b2p = _pad2d(b2, 1, HIDDEN_PAD)                               # (1, 128) f32
    w3tp = _pad2d(w3.T, out_pad, HIDDEN_PAD).astype(bf16)         # (out_pad, 128)
    b3tp = _pad2d(b3.T, out_pad, 1)                               # (out_pad, 1) f32

    grid = (b_pad // tb,)

    # weights / biases: full-array blocks, constant index_map -> resident in
    # VMEM across all grid steps (no re-DMA per batch tile).
    resident = lambda a: pl.BlockSpec(a.shape, lambda i: (0,) * a.ndim)

    flops = 2 * b_pad * HIDDEN_PAD * (din_pad + HIDDEN_PAD + out_pad)
    bytes_accessed = int(
        x_p.size * 4 + out_pad * b_pad * 4
        + sum(int(a.size) * a.dtype.itemsize
              for a in (w1p, b1p, w2p, b2p, w3tp, b3tp)))

    out_t = pl.pallas_call(
        _mlp_kernel,
        out_shape=jax.ShapeDtypeStruct((out_pad, b_pad), jnp.float32),
        grid_spec=pltpu.PrefetchScalarGridSpec(
            num_scalar_prefetch=0,
            grid=grid,
            in_specs=[
                pl.BlockSpec((tb, din_pad), lambda i: (i, 0)),    # x, batch-tiled
                resident(w1p), resident(b1p),
                resident(w2p), resident(b2p),
                resident(w3tp), resident(b3tp),
            ],
            out_specs=pl.BlockSpec((out_pad, tb), lambda i: (0, i)),
        ),
        compiler_params=pltpu.CompilerParams(
            dimension_semantics=("parallel",),
        ),
        cost_estimate=pl.CostEstimate(
            flops=flops, transcendentals=0, bytes_accessed=bytes_accessed),
    )(x_p, w1p, b1p, w2p, b2p, w3tp, b3tp)

    # drop padding and undo the (tiny) transpose -> (batch, out_dim)
    return out_t[:out_dim, :batch].T


def init_params(key, input_dimension, output_dimension):
    """Deterministic init mimicking torch.nn.Linear default
    (U[-1/sqrt(fan_in), +1/sqrt(fan_in)]).  Weights are returned already
    transposed to (in_features, out_features); biases are (1, out_features)."""
    def linear(k, fan_in, fan_out):
        kw, kb = jax.random.split(k)
        bound = 1.0 / jnp.sqrt(jnp.float32(fan_in))
        w = jax.random.uniform(kw, (fan_in, fan_out), jnp.float32, -bound, bound)
        b = jax.random.uniform(kb, (1, fan_out), jnp.float32, -bound, bound)
        return w, b

    k1, k2, k3 = jax.random.split(key, 3)
    w1, b1 = linear(k1, input_dimension, HIDDEN)
    w2, b2 = linear(k2, HIDDEN, HIDDEN)
    w3, b3 = linear(k3, HIDDEN, output_dimension)
    return (w1, b1, w2, b2, w3, b3)


def reference_forward(x, params):
    """Plain-JAX f32 reference for correctness check."""
    w1, b1, w2, b2, w3, b3 = params
    h1 = jnp.maximum(x @ w1 + b1, 0.0)
    h2 = jnp.maximum(h1 @ w2 + b2, 0.0)
    return h2 @ w3 + b3


if __name__ == "__main__":
    input_dimension = 4     # e.g. a small state vector
    output_dimension = 2    # e.g. a small action-value head

    key = jax.random.PRNGKey(0)
    k_params, k_x1, k_x2 = jax.random.split(key, 3)
    params = init_params(k_params, input_dimension, output_dimension)

    # bf16 matmul inputs (f32 accumulate) => relaxed tolerance vs. f32 reference.
    TOL = dict(atol=3e-2, rtol=3e-2)

    # --- small batch (single grid step, exercises batch/din/out padding) ---
    x_small = jax.random.normal(k_x1, (8, input_dimension), jnp.float32)
    out_small = jax.block_until_ready(network_forward(x_small, params))
    ref_small = reference_forward(x_small, params)
    assert out_small.shape == (8, output_dimension)
    assert jnp.allclose(out_small, ref_small, **TOL), "small-batch mismatch"

    # --- larger, non-tile-multiple batch (exercises a multi-step parallel grid) ---
    x_big = jax.random.normal(k_x2, (1000, input_dimension), jnp.float32)
    out_big = jax.block_until_ready(network_forward(x_big, params, batch_tile=2048))
    ref_big = reference_forward(x_big, params)
    assert out_big.shape == (1000, output_dimension)
    assert jnp.allclose(out_big, ref_big, **TOL), "large-batch mismatch"

    print("KERNEL_OK")
</pallas_src>

<mosaic_0001>
module attributes {stable_mosaic.version = 11 : i64} {
  func.func @_mlp_kernel(%arg0: i32, %arg1: memref<128x8xf32, #tpu.memory_space<vmem>>, %arg2: memref<8x128xbf16, #tpu.memory_space<vmem>>, %arg3: memref<1x128xf32, #tpu.memory_space<vmem>>, %arg4: memref<128x128xbf16, #tpu.memory_space<vmem>>, %arg5: memref<1x128xf32, #tpu.memory_space<vmem>>, %arg6: memref<8x128xbf16, #tpu.memory_space<vmem>>, %arg7: memref<8x1xf32, #tpu.memory_space<vmem>>, %arg8: memref<8x128xf32, #tpu.memory_space<vmem>>) attributes {dimension_semantics = [#tpu.dimension_semantics<parallel>], iteration_bounds = array<i64: 1>, scalar_prefetch = 0 : i64, scratch_operands = 0 : i64, tpu.core_type = #tpu.core_type<tc>, window_params = [{transform_indices = @transform_0, window_bounds = array<i64: 128, 8>}, {pipeline_mode = #tpu.pipeline_mode<synchronous>, transform_indices = @transform_1, window_bounds = array<i64: 8, 128>}, {pipeline_mode = #tpu.pipeline_mode<synchronous>, transform_indices = @transform_2, window_bounds = array<i64: 1, 128>}, {pipeline_mode = #tpu.pipeline_mode<synchronous>, transform_indices = @transform_3, window_bounds = array<i64: 128, 128>}, {pipeline_mode = #tpu.pipeline_mode<synchronous>, transform_indices = @transform_4, window_bounds = array<i64: 1, 128>}, {pipeline_mode = #tpu.pipeline_mode<synchronous>, transform_indices = @transform_5, window_bounds = array<i64: 8, 128>}, {pipeline_mode = #tpu.pipeline_mode<synchronous>, transform_indices = @transform_6, window_bounds = array<i64: 8, 1>}, {transform_indices = @transform_7, window_bounds = array<i64: 8, 128>}]} {
    %c0 = arith.constant 0 : index
    %c0_0 = arith.constant 0 : index
    %0 = vector.load %arg1[%c0, %c0_0] : memref<128x8xf32, #tpu.memory_space<vmem>>, vector<128x8xf32>
    %1 = arith.truncf %0 : vector<128x8xf32> to vector<128x8xbf16>
    %c0_1 = arith.constant 0 : index
    %c0_2 = arith.constant 0 : index
    %2 = vector.load %arg2[%c0_1, %c0_2] : memref<8x128xbf16, #tpu.memory_space<vmem>>, vector<8x128xbf16>
    %cst = arith.constant dense<0.000000e+00> : vector<128x128xf32>
    %3 = tpu.matmul %1, %2, %cst {dimension_numbers = #tpu.dot_dimension_numbers<[1], [0], [0], [1], [0, 0, 1, 1], [], []>} : vector<128x8xbf16>, vector<8x128xbf16>, vector<128x128xf32> -> vector<128x128xf32>
    %c0_3 = arith.constant 0 : index
    %c0_4 = arith.constant 0 : index
    %4 = vector.load %arg3[%c0_3, %c0_4] : memref<1x128xf32, #tpu.memory_space<vmem>>, vector<1x128xf32>
    %5 = vector.broadcast %4 : vector<1x128xf32> to vector<128x128xf32>
    %6 = arith.addf %3, %5 : vector<128x128xf32>
    %cst_5 = arith.constant 0.000000e+00 : f32
    %7 = vector.broadcast %cst_5 : f32 to vector<128x128xf32>
    %8 = arith.maximumf %6, %7 : vector<128x128xf32>
    %9 = arith.truncf %8 : vector<128x128xf32> to vector<128x128xbf16>
    %c0_6 = arith.constant 0 : index
    %c0_7 = arith.constant 0 : index
    %10 = vector.load %arg4[%c0_6, %c0_7] : memref<128x128xbf16, #tpu.memory_space<vmem>>, vector<128x128xbf16>
    %cst_8 = arith.constant dense<0.000000e+00> : vector<128x128xf32>
    %11 = tpu.matmul %9, %10, %cst_8 {dimension_numbers = #tpu.dot_dimension_numbers<[1], [0], [0], [1], [0, 0, 1, 1], [], []>} : vector<128x128xbf16>, vector<128x128xbf16>, vector<128x128xf32> -> vector<128x128xf32>
    %c0_9 = arith.constant 0 : index
    %c0_10 = arith.constant 0 : index
    %12 = vector.load %arg5[%c0_9, %c0_10] : memref<1x128xf32, #tpu.memory_space<vmem>>, vector<1x128xf32>
    %13 = vector.broadcast %12 : vector<1x128xf32> to vector<128x128xf32>
    %14 = arith.addf %11, %13 : vector<128x128xf32>
    %cst_11 = arith.constant 0.000000e+00 : f32
    %15 = vector.broadcast %cst_11 : f32 to vector<128x128xf32>
    %16 = arith.maximumf %14, %15 : vector<128x128xf32>
    %17 = arith.truncf %16 : vector<128x128xf32> to vector<128x128xbf16>
    %c0_12 = arith.constant 0 : index
    %c0_13 = arith.constant 0 : index
    %18 = vector.load %arg6[%c0_12, %c0_13] : memref<8x128xbf16, #tpu.memory_space<vmem>>, vector<8x128xbf16>
    %cst_14 = arith.constant dense<0.000000e+00> : vector<8x128xf32>
    %19 = tpu.matmul %18, %17, %cst_14 {dimension_numbers = #tpu.dot_dimension_numbers<[1], [1], [0], [0], [0, 0, 1, 0], [], []>} : vector<8x128xbf16>, vector<128x128xbf16>, vector<8x128xf32> -> vector<8x128xf32>
    %c0_15 = arith.constant 0 : index
    %c0_16 = arith.constant 0 : index
    %20 = vector.load %arg7[%c0_15, %c0_16] : memref<8x1xf32, #tpu.memory_space<vmem>>, vector<8x1xf32>
    %21 = vector.broadcast %20 : vector<8x1xf32> to vector<8x128xf32>
    %22 = arith.addf %19, %21 : vector<8x128xf32>
    %c0_17 = arith.constant 0 : index
    %c0_18 = arith.constant 0 : index
    %23 = vector.load %arg8[%c0_17, %c0_18] : memref<8x128xf32, #tpu.memory_space<vmem>>, vector<8x128xf32>
    tpu.vector_store %arg8[%c0_17, %c0_18], %22 {strides = array<i32>} : memref<8x128xf32, #tpu.memory_space<vmem>>, vector<8x128xf32>,
    return
  }
  func.func @transform_0(%arg0: i32) -> (i32, i32) {
    %c0_i32 = arith.constant 0 : i32
    %c0_i32_0 = arith.constant 0 : i32
    return %arg0, %c0_i32 : i32, i32
  }
  func.func @transform_1(%arg0: i32) -> (i32, i32) {
    %c0_i32 = arith.constant 0 : i32
    %c0_i32_0 = arith.constant 0 : i32
    %c0_i32_1 = arith.constant 0 : i32
    return %c0_i32, %c0_i32_0 : i32, i32
  }
  func.func @transform_2(%arg0: i32) -> (i32, i32) {
    %c0_i32 = arith.constant 0 : i32
    %c0_i32_0 = arith.constant 0 : i32
    %c0_i32_1 = arith.constant 0 : i32
    return %c0_i32, %c0_i32_0 : i32, i32
  }
  func.func @transform_3(%arg0: i32) -> (i32, i32) {
    %c0_i32 = arith.constant 0 : i32
    %c0_i32_0 = arith.constant 0 : i32
    %c0_i32_1 = arith.constant 0 : i32
    return %c0_i32, %c0_i32_0 : i32, i32
  }
  func.func @transform_4(%arg0: i32) -> (i32, i32) {
    %c0_i32 = arith.constant 0 : i32
    %c0_i32_0 = arith.constant 0 : i32
    %c0_i32_1 = arith.constant 0 : i32
    return %c0_i32, %c0_i32_0 : i32, i32
  }
  func.func @transform_5(%arg0: i32) -> (i32, i32) {
    %c0_i32 = arith.constant 0 : i32
    %c0_i32_0 = arith.constant 0 : i32
    %c0_i32_1 = arith.constant 0 : i32
    return %c0_i32, %c0_i32_0 : i32, i32
  }
  func.func @transform_6(%arg0: i32) -> (i32, i32) {
    %c0_i32 = arith.constant 0 : i32
    %c0_i32_0 = arith.constant 0 : i32
    %c0_i32_1 = arith.constant 0 : i32
    return %c0_i32, %c0_i32_0 : i32, i32
  }
  func.func @transform_7(%arg0: i32) -> (i32, i32) {
    %c0_i32 = arith.constant 0 : i32
    %c0_i32_0 = arith.constant 0 : i32
    return %c0_i32, %arg0 : i32, i32
  }
}

</mosaic_0001>

<llo_original>
// kernel: tpu_custom_call.1
$region0: #{tpu_custom_call.1}
  #allocation0 [shape = 'u32[]', space=smem, size = 0x4, offset = 0x4, fixed_abs, tag = 'smem constant byte address 0x4 - core index']
  #allocation1 [shape = 'u32[144,128]{1,0:T(1,128)}', space=vmem, size = 0x12000, scoped, tag = 'internal scratch']
  %s0 = inlined_call_operand.vmem [shape: f32[128,8], index: 0, kind: input, shape index: {}]
  %s1 = inlined_call_operand.vmem [shape: bf16[8,128], index: 1, kind: input, shape index: {}]
  %s2 = inlined_call_operand.vmem [shape: f32[1,128], index: 2, kind: input, shape index: {}]
  %s3 = inlined_call_operand.vmem [shape: bf16[128,128], index: 3, kind: input, shape index: {}]
  %s4 = inlined_call_operand.vmem [shape: f32[1,128], index: 4, kind: input, shape index: {}]
  %s5 = inlined_call_operand.vmem [shape: bf16[8,128], index: 5, kind: input, shape index: {}]
  %s6 = inlined_call_operand.vmem [shape: f32[8,1], index: 6, kind: input, shape index: {}]
  %s7 = inlined_call_operand.hbm [shape: f32[8,128], index: 7, kind: output, shape index: {}]
  %s8 = sld [smem:[#allocation0]]
  $region38: #{tpu_custom_call.1} parent=0
    _
  %s10 = ssub.s32 1, %s8
  %s11 = scalar_select 0, %s10, %s8
  $region1: #{tpu_custom_call.1} parent=0
    #allocation2 [shape = 'u8[4096]{0}', space=vmem, size = 0x1000, scoped, tag = 'output window, operand 0, single buffered']
    #allocation3 [shape = 's32[1]{0}', space=sflag, size = 0x4, scoped, tag = 'scoped memory for tpu_custom_call.1']
    %12 = vsyncpa [#allocation3], 0
    // Predicated region
    $region2: #{tpu_custom_call.1} parent=1 // pred_check
      _
    $region3: #{tpu_custom_call.1} parent=1 // pred_check_branch
      %14 = sbr.rel (0) target = $region5
    $region4: #{tpu_custom_call.1} parent=1 // pred_region
      _
    $region5: #{tpu_custom_call.1} parent=1 // pred_fallthru
      _
    // Predicated region
    $region6: #{tpu_custom_call.1} parent=1 // pred_check
      _
    $region7: #{tpu_custom_call.1} parent=1 // pred_check_branch
      %16 = sbr.rel (0) target = $region9
    $region8: #{tpu_custom_call.1} parent=1 // pred_region
      _
    $region9: #{tpu_custom_call.1} parent=1 // pred_fallthru
      _
    // Predicated region
    $region10: #{tpu_custom_call.1} parent=1 // pred_check
      _
    $region11: #{tpu_custom_call.1} parent=1 // pred_check_branch
      %18 = sbr.rel (0) target = $region13
    $region12: #{tpu_custom_call.1} parent=1 // pred_region
      _
    $region13: #{tpu_custom_call.1} parent=1 // pred_fallthru
      _
    // Predicated region
    $region14: #{tpu_custom_call.1} parent=1 // pred_check
      _
    $region15: #{tpu_custom_call.1} parent=1 // pred_check_branch
      %20 = sbr.rel (0) target = $region17
    $region16: #{tpu_custom_call.1} parent=1 // pred_region
      _
    $region17: #{tpu_custom_call.1} parent=1 // pred_fallthru
      _
    // Predicated region
    $region18: #{tpu_custom_call.1} parent=1 // pred_check
      _
    $region19: #{tpu_custom_call.1} parent=1 // pred_check_branch
      %22 = sbr.rel (0) target = $region21
    $region20: #{tpu_custom_call.1} parent=1 // pred_region
      _
    $region21: #{tpu_custom_call.1} parent=1 // pred_fallthru
      _
    // Predicated region
    $region22: #{tpu_custom_call.1} parent=1 // pred_check
      _
    $region23: #{tpu_custom_call.1} parent=1 // pred_check_branch
      %24 = sbr.rel (0) target = $region25
    $region24: #{tpu_custom_call.1} parent=1 // pred_region
      _
    $region25: #{tpu_custom_call.1} parent=1 // pred_fallthru
      _
    // Predicated region
    $region26: #{tpu_custom_call.1} parent=1 // pred_check
      _
    $region27: #{tpu_custom_call.1} parent=1 // pred_check_branch
      %26 = sbr.rel (0) target = $region29
    $region28: #{tpu_custom_call.1} parent=1 // pred_region
      _
    $region29: #{tpu_custom_call.1} parent=1 // pred_fallthru
      _
    %v28 = vld [vmem:[%s0] sm:$0xff]
    %v29 = vld [vmem:[%s0 + $0x8] sm:$0xff]
    %v30 = vld [vmem:[%s0 + $0x10] sm:$0xff]
    %v31 = vld [vmem:[%s0 + $0x18] sm:$0xff]
    %v32 = vld [vmem:[%s0 + $0x20] sm:$0xff]
    %v33 = vld [vmem:[%s0 + $0x28] sm:$0xff]
    %v34 = vld [vmem:[%s0 + $0x30] sm:$0xff]
    %v35 = vld [vmem:[%s0 + $0x38] sm:$0xff]
    %v36 = vld [vmem:[%s0 + $0x40] sm:$0xff]
    %v37 = vld [vmem:[%s0 + $0x48] sm:$0xff]
    %v38 = vld [vmem:[%s0 + $0x50] sm:$0xff]
    %v39 = vld [vmem:[%s0 + $0x58] sm:$0xff]
    %v40 = vld [vmem:[%s0 + $0x60] sm:$0xff]
    %v41 = vld [vmem:[%s0 + $0x68] sm:$0xff]
    %v42 = vld [vmem:[%s0 + $0x70] sm:$0xff]
    %v43 = vld [vmem:[%s0 + $0x78] sm:$0xff]
    %v44 = vpack.c.bf16 %v29, %v28
    %v45 = vpack.c.bf16 %v31, %v30
    %v46 = vpack.c.bf16 %v33, %v32
    %v47 = vpack.c.bf16 %v35, %v34
    %v48 = vpack.c.bf16 %v37, %v36
    %v49 = vpack.c.bf16 %v39, %v38
    %v50 = vpack.c.bf16 %v41, %v40
    %v51 = vpack.c.bf16 %v43, %v42
    %v52 = vld [vmem:[%s1] sm:$0xf]
    %v53 = vld [vmem:[%s2] sm:$0x1]
    %v55 = vlaneseq
    %v56 = vshrl.u32 %v55, 7
    %v57 = vsub.s32 0, %v56
    %v58 = vrot.slane %v53, %v57
    %vm60 = vcmask 64512
    %v62 = vsel %vm60, %v44, 0
    %v65 = vsel %vm60, %v45, 0
    %v68 = vsel %vm60, %v46, 0
    %v71 = vsel %vm60, %v47, 0
    %v74 = vsel %vm60, %v48, 0
    %v77 = vsel %vm60, %v49, 0
    %v80 = vsel %vm60, %v50, 0
    %v83 = vsel %vm60, %v51, 0
    %vm85 = vcmask 1043456
    %v87 = vsel %vm85, %v52, 0
    %89 = vmatprep.subr.bf16.mxu0 0
    %90 = vmatpush1.bf16.msra.mxu0 %v87
    %91 = vmatprep.subr.bf16.mxu0 0
    %92 = vmatpush1.bf16.msra.mxu0 0
    %93 = vmatprep.subr.bf16.mxu0 0
    %94 = vmatpush1.bf16.msra.mxu0 0
    %95 = vmatprep.subr.bf16.mxu0 0
    %96 = vmatpush1.bf16.msra.mxu0 0
    %97 = vmatprep.subr.bf16.mxu0 0
    %98 = vmatpush1.bf16.msra.mxu0 0
    %99 = vmatprep.subr.bf16.mxu0 0
    %100 = vmatpush1.bf16.msra.mxu0 0
    %101 = vmatprep.subr.bf16.mxu0 0
    %102 = vmatpush1.bf16.msra.mxu0 0
    %103 = vmatprep.subr.bf16.mxu0 0
    %104 = vmatpush1.bf16.msra.mxu0 0
    %105 = vmatprep.subr.bf16.mxu0 0
    %106 = vmatpush1.bf16.msra.mxu0 0
    %107 = vmatprep.subr.bf16.mxu0 0
    %108 = vmatpush1.bf16.msra.mxu0 0
    %109 = vmatprep.subr.bf16.mxu0 0
    %110 = vmatpush1.bf16.msra.mxu0 0
    %111 = vmatprep.subr.bf16.mxu0 0
    %112 = vmatpush1.bf16.msra.mxu0 0
    %113 = vmatprep.subr.bf16.mxu0 0
    %114 = vmatpush1.bf16.msra.mxu0 0
    %115 = vmatprep.subr.bf16.mxu0 0
    %116 = vmatpush1.bf16.msra.mxu0 0
    %117 = vmatprep.subr.bf16.mxu0 0
    %118 = vmatpush1.bf16.msra.mxu0 0
    %119 = vmatprep.subr.bf16.mxu0 0
    %120 = vmatpush1.bf16.msra.mxu0 0
    %121 = vmatprep.mubr.bf16.mxu0 0
    %122 = vmatmul.mubr.bf16.gmra.mrb[0].mxu0 %v62
    %v123 = vpop.f32.mrb[0].mxu0
    %v124 = vadd.f32 %v58, %v123
    %v125 = vpop.f32.mrb[0].mxu0
    %v126 = vpop.f32.mrb[0].mxu0
    %v127 = vadd.f32 %v58, %v126
    %v128 = vpop.f32.mrb[0].mxu0
    %129 = vmatprep.mubr.bf16.mxu0 0
    %130 = vmatmul.mubr.bf16.gmra.mrb[0].mxu0 %v65
    %v131 = vpop.f32.mrb[0].mxu0
    %v132 = vadd.f32 %v58, %v131
    %v133 = vpop.f32.mrb[0].mxu0
    %v134 = vpop.f32.mrb[0].mxu0
    %v135 = vadd.f32 %v58, %v134
    %v136 = vpop.f32.mrb[0].mxu0
    %137 = vmatprep.mubr.bf16.mxu0 0
    %138 = vmatmul.mubr.bf16.gmra.mrb[0].mxu0 %v68
    %v139 = vpop.f32.mrb[0].mxu0
    %v140 = vadd.f32 %v58, %v139
    %v141 = vpop.f32.mrb[0].mxu0
    %v142 = vpop.f32.mrb[0].mxu0
    %v143 = vadd.f32 %v58, %v142
    %v144 = vpop.f32.mrb[0].mxu0
    %145 = vmatprep.mubr.bf16.mxu0 0
    %146 = vmatmul.mubr.bf16.gmra.mrb[0].mxu0 %v71
    %v147 = vpop.f32.mrb[0].mxu0
    %v148 = vadd.f32 %v58, %v147
    %v149 = vpop.f32.mrb[0].mxu0
    %v150 = vpop.f32.mrb[0].mxu0
    %v151 = vadd.f32 %v58, %v150
    %v152 = vpop.f32.mrb[0].mxu0
    %153 = vmatprep.mubr.bf16.mxu0 0
    %154 = vmatmul.mubr.bf16.gmra.mrb[0].mxu0 %v74
    %v155 = vpop.f32.mrb[0].mxu0
    %v156 = vadd.f32 %v58, %v155
    %v157 = vpop.f32.mrb[0].mxu0
    %v158 = vpop.f32.mrb[0].mxu0
    %v159 = vadd.f32 %v58, %v158
    %v160 = vpop.f32.mrb[0].mxu0
    %161 = vmatprep.mubr.bf16.mxu0 0
    %162 = vmatmul.mubr.bf16.gmra.mrb[0].mxu0 %v77
    %v163 = vpop.f32.mrb[0].mxu0
    %v164 = vadd.f32 %v58, %v163
    %v165 = vpop.f32.mrb[0].mxu0
    %v166 = vpop.f32.mrb[0].mxu0
    %v167 = vadd.f32 %v58, %v166
    %v168 = vpop.f32.mrb[0].mxu0
    %169 = vmatprep.mubr.bf16.mxu0 0
    %170 = vmatmul.mubr.bf16.gmra.mrb[0].mxu0 %v80
    %v171 = vpop.f32.mrb[0].mxu0
    %v172 = vadd.f32 %v58, %v171
    %v173 = vpop.f32.mrb[0].mxu0
    %v174 = vpop.f32.mrb[0].mxu0
    %v175 = vadd.f32 %v58, %v174
    %v176 = vpop.f32.mrb[0].mxu0
    %177 = vmatprep.mubr.bf16.mxu0 0
    %178 = vmatmul.mubr.bf16.gmra.mrb[0].mxu0 %v83
    %v179 = vpop.f32.mrb[0].mxu0
    %v180 = vadd.f32 %v58, %v179
    %v181 = vpop.f32.mrb[0].mxu0
    %v182 = vpop.f32.mrb[0].mxu0
    %v183 = vadd.f32 %v58, %v182
    %v184 = vpop.f32.mrb[0].mxu0
    %185 = vdwg.mxu0
    %v186 = vmax.f32 %v124, 0.0
    %v187 = vmax.f32 %v127, 0.0
    %v188 = vmax.f32 %v132, 0.0
    %v189 = vmax.f32 %v135, 0.0
    %v190 = vmax.f32 %v140, 0.0
    %v191 = vmax.f32 %v143, 0.0
    %v192 = vmax.f32 %v148, 0.0
    %v193 = vmax.f32 %v151, 0.0
    %v194 = vmax.f32 %v156, 0.0
    %v195 = vmax.f32 %v159, 0.0
    %v196 = vmax.f32 %v164, 0.0
    %v197 = vmax.f32 %v167, 0.0
    %v198 = vmax.f32 %v172, 0.0
    %v199 = vmax.f32 %v175, 0.0
    %v200 = vmax.f32 %v180, 0.0
    %v201 = vmax.f32 %v183, 0.0
    %v202 = vpack.c.bf16 %v187, %v186
    %v203 = vpack.c.bf16 %v189, %v188
    %v204 = vpack.c.bf16 %v191, %v190
    %v205 = vpack.c.bf16 %v193, %v192
    %v206 = vpack.c.bf16 %v195, %v194
    %v207 = vpack.c.bf16 %v197, %v196
    %v208 = vpack.c.bf16 %v199, %v198
    %v209 = vpack.c.bf16 %v201, %v200
    %v210 = vld [vmem:[%s3] sm:$0xf]
    %v211 = vld [vmem:[%s3 + $0x4] sm:$0xf]
    %v212 = vld [vmem:[%s3 + $0x8] sm:$0xf]
    %v213 = vld [vmem:[%s3 + $0xc] sm:$0xf]
    %v214 = vld [vmem:[%s3 + $0x10] sm:$0xf]
    %v215 = vld [vmem:[%s3 + $0x14] sm:$0xf]
    %v216 = vld [vmem:[%s3 + $0x18] sm:$0xf]
    %v217 = vld [vmem:[%s3 + $0x1c] sm:$0xf]
    %v218 = vld [vmem:[%s3 + $0x20] sm:$0xf]
    %v219 = vld [vmem:[%s3 + $0x24] sm:$0xf]
    %v220 = vld [vmem:[%s3 + $0x28] sm:$0xf]
    %v221 = vld [vmem:[%s3 + $0x2c] sm:$0xf]
    %v222 = vld [vmem:[%s3 + $0x30] sm:$0xf]
    %v223 = vld [vmem:[%s3 + $0x34] sm:$0xf]
    %v224 = vld [vmem:[%s3 + $0x38] sm:$0xf]
    %v225 = vld [vmem:[%s3 + $0x3c] sm:$0xf]
    %v226 = vld [vmem:[%s4] sm:$0x1]
    %v228 = vlaneseq
    %v229 = vshrl.u32 %v228, 7
    %v230 = vsub.s32 0, %v229
    %v231 = vrot.slane %v226, %v230
    %v249 = vunpack.c.l.b16 %v210
    %v250 = vunpack.c.l.b16 %v211
    %v251 = vunpack.c.l.b16 %v212
    %v252 = vunpack.c.l.b16 %v213
    %v253 = vunpack.c.l.b16 %v214
    %v254 = vunpack.c.l.b16 %v215
    %v255 = vunpack.c.l.b16 %v216
    %v256 = vunpack.c.l.b16 %v217
    %v257 = vunpack.c.l.b16 %v218
    %v258 = vunpack.c.l.b16 %v219
    %v259 = vunpack.c.l.b16 %v220
    %v260 = vunpack.c.l.b16 %v221
    %v261 = vunpack.c.l.b16 %v222
    %v262 = vunpack.c.l.b16 %v223
    %v263 = vunpack.c.l.b16 %v224
    %v264 = vunpack.c.l.b16 %v225
    %v265 = vpack.c.b16 %v250, %v249
    %v266 = vpack.c.b16 %v252, %v251
    %v267 = vpack.c.b16 %v254, %v253
    %v268 = vpack.c.b16 %v256, %v255
    %v269 = vpack.c.b16 %v258, %v257
    %v270 = vpack.c.b16 %v260, %v259
    %v271 = vpack.c.b16 %v262, %v261
    %v272 = vpack.c.b16 %v264, %v263
    %281 = vmatprep.subr.bf16.mxu0 0
    %282 = vmatpush1.bf16.msra.mxu0 %v265
    %283 = vmatprep.subr.bf16.mxu0 0
    %284 = vmatpush1.bf16.msra.mxu0 %v266
    %285 = vmatprep.subr.bf16.mxu0 0
    %286 = vmatpush1.bf16.msra.mxu0 %v267
    %287 = vmatprep.subr.bf16.mxu0 0
    %288 = vmatpush1.bf16.msra.mxu0 %v268
    %289 = vmatprep.subr.bf16.mxu0 0
    %290 = vmatpush1.bf16.msra.mxu0 %v269
    %291 = vmatprep.subr.bf16.mxu0 0
    %292 = vmatpush1.bf16.msra.mxu0 %v270
    %293 = vmatprep.subr.bf16.mxu0 0
    %294 = vmatpush1.bf16.msra.mxu0 %v271
    %295 = vmatprep.subr.bf16.mxu0 0
    %296 = vmatpush1.bf16.msra.mxu0 %v272
    %297 = vmatprep.subr.bf16.mxu0 0
    %298 = vmatpush1.bf16.msra.mxu0 0
    %299 = vmatprep.subr.bf16.mxu0 0
    %300 = vmatpush1.bf16.msra.mxu0 0
    %301 = vmatprep.subr.bf16.mxu0 0
    %302 = vmatpush1.bf16.msra.mxu0 0
    %303 = vmatprep.subr.bf16.mxu0 0
    %304 = vmatpush1.bf16.msra.mxu0 0
    %305 = vmatprep.subr.bf16.mxu0 0
    %306 = vmatpush1.bf16.msra.mxu0 0
    %307 = vmatprep.subr.bf16.mxu0 0
    %308 = vmatpush1.bf16.msra.mxu0 0
    %309 = vmatprep.subr.bf16.mxu0 0
    %310 = vmatpush1.bf16.msra.mxu0 0
    %311 = vmatprep.subr.bf16.mxu0 0
    %312 = vmatpush1.bf16.msra.mxu0 0
    %313 = vmatprep.mubr.bf16.mxu0 0
    %314 = vmatmul.mubr.bf16.gmra.mrb[0].mxu0 %v202
    %v315 = vpop.f32.mrb[0].mxu0
    %v316 = vadd.f32 %v231, %v315
    %v317 = vpop.f32.mrb[0].mxu0
    %v318 = vpop.f32.mrb[0].mxu0
    %v319 = vadd.f32 %v231, %v318
    %v320 = vpop.f32.mrb[0].mxu0
    %321 = vmatprep.mubr.bf16.mxu0 0
    %322 = vmatmul.mubr.bf16.gmra.mrb[0].mxu0 %v203
    %v323 = vpop.f32.mrb[0].mxu0
    %v324 = vadd.f32 %v231, %v323
    %v325 = vpop.f32.mrb[0].mxu0
    %v326 = vpop.f32.mrb[0].mxu0
    %v327 = vadd.f32 %v231, %v326
    %v328 = vpop.f32.mrb[0].mxu0
    %329 = vmatprep.mubr.bf16.mxu0 0
    %330 = vmatmul.mubr.bf16.gmra.mrb[0].mxu0 %v204
    %v331 = vpop.f32.mrb[0].mxu0
    %v332 = vadd.f32 %v231, %v331
    %v333 = vpop.f32.mrb[0].mxu0
    %v334 = vpop.f32.mrb[0].mxu0
    %v335 = vadd.f32 %v231, %v334
    %v336 = vpop.f32.mrb[0].mxu0
    %337 = vmatprep.mubr.bf16.mxu0 0
    %338 = vmatmul.mubr.bf16.gmra.mrb[0].mxu0 %v205
    %v339 = vpop.f32.mrb[0].mxu0
    %v340 = vadd.f32 %v231, %v339
    %v341 = vpop.f32.mrb[0].mxu0
    %v342 = vpop.f32.mrb[0].mxu0
    %v343 = vadd.f32 %v231, %v342
    %v344 = vpop.f32.mrb[0].mxu0
    %345 = vmatprep.mubr.bf16.mxu0 0
    %346 = vmatmul.mubr.bf16.gmra.mrb[0].mxu0 %v206
    %v347 = vpop.f32.mrb[0].mxu0
    %v348 = vadd.f32 %v231, %v347
    %v349 = vpop.f32.mrb[0].mxu0
    %v350 = vpop.f32.mrb[0].mxu0
    %v351 = vadd.f32 %v231, %v350
    %v352 = vpop.f32.mrb[0].mxu0
    %353 = vmatprep.mubr.bf16.mxu0 0
    %354 = vmatmul.mubr.bf16.gmra.mrb[0].mxu0 %v207
    %v355 = vpop.f32.mrb[0].mxu0
    %v356 = vadd.f32 %v231, %v355
    %v357 = vpop.f32.mrb[0].mxu0
    %v358 = vpop.f32.mrb[0].mxu0
    %v359 = vadd.f32 %v231, %v358
    %v360 = vpop.f32.mrb[0].mxu0
    %361 = vmatprep.mubr.bf16.mxu0 0
    %362 = vmatmul.mubr.bf16.gmra.mrb[0].mxu0 %v208
    %v363 = vpop.f32.mrb[0].mxu0
    %v364 = vadd.f32 %v231, %v363
    %v365 = vpop.f32.mrb[0].mxu0
    %v366 = vpop.f32.mrb[0].mxu0
    %v367 = vadd.f32 %v231, %v366
    %v368 = vpop.f32.mrb[0].mxu0
    %369 = vmatprep.mubr.bf16.mxu0 0
    %370 = vmatmul.mubr.bf16.gmra.mrb[0].mxu0 %v209
    %v371 = vpop.f32.mrb[0].mxu0
    %v372 = vadd.f32 %v231, %v371
    %v373 = vpop.f32.mrb[0].mxu0
    %v374 = vpop.f32.mrb[0].mxu0
    %v375 = vadd.f32 %v231, %v374
    %v376 = vpop.f32.mrb[0].mxu0
    %377 = vdwg.mxu0
    %v378 = vmax.f32 %v316, 0.0
    %v379 = vmax.f32 %v319, 0.0
    %v380 = vmax.f32 %v324, 0.0
    %v381 = vmax.f32 %v327, 0.0
    %v382 = vmax.f32 %v332, 0.0
    %v383 = vmax.f32 %v335, 0.0
    %v384 = vmax.f32 %v340, 0.0
    %v385 = vmax.f32 %v343, 0.0
    %v386 = vmax.f32 %v348, 0.0
    %v387 = vmax.f32 %v351, 0.0
    %v388 = vmax.f32 %v356, 0.0
    %v389 = vmax.f32 %v359, 0.0
    %v390 = vmax.f32 %v364, 0.0
    %v391 = vmax.f32 %v367, 0.0
    %v392 = vmax.f32 %v372, 0.0
    %v393 = vmax.f32 %v375, 0.0
    %v394 = vpack.c.bf16 %v379, %v378
    %v395 = vpack.c.bf16 %v381, %v380
    %v396 = vpack.c.bf16 %v383, %v382
    %v397 = vpack.c.bf16 %v385, %v384
    %v398 = vpack.c.bf16 %v387, %v386
    %v399 = vpack.c.bf16 %v389, %v388
    %v400 = vpack.c.bf16 %v391, %v390
    %v401 = vpack.c.bf16 %v393, %v392
    %v402 = vld [vmem:[%s5] sm:$0xf]
    %v403 = vld [vmem:[%s6] sm:$0xff]
    %405 = vset.pattern.permute.xlu0 0
    %406 = vperm.xlu0 %405, %v403
    %v407 = vpop.permute.xlu0 %406
    %409 = vmatprep.subr.bf16.mxu0 0
    %410 = vmatpush1.bf16.xpose.msra.mxu0 %v394
    %411 = vmatprep.subr.bf16.mxu0 0
    %412 = vmatpush1.bf16.xpose.msra.mxu0 %v395
    %413 = vmatprep.subr.bf16.mxu0 0
    %414 = vmatpush1.bf16.xpose.msra.mxu0 %v396
    %415 = vmatprep.subr.bf16.mxu0 0
    %416 = vmatpush1.bf16.xpose.msra.mxu0 %v397
    %417 = vmatprep.subr.bf16.mxu0 0
    %418 = vmatpush1.bf16.xpose.msra.mxu0 %v398
    %419 = vmatprep.subr.bf16.mxu0 0
    %420 = vmatpush1.bf16.xpose.msra.mxu0 %v399
    %421 = vmatprep.subr.bf16.mxu0 0
    %422 = vmatpush1.bf16.xpose.msra.mxu0 %v400
    %423 = vmatprep.subr.bf16.mxu0 0
    %424 = vmatpush1.bf16.xpose.msra.mxu0 %v401
    %425 = vmatprep.subr.bf16.mxu0 0
    %426 = vmatpush1.bf16.xpose.msra.mxu0 0
    %427 = vmatprep.subr.bf16.mxu0 0
    %428 = vmatpush1.bf16.xpose.msra.mxu0 0
    %429 = vmatprep.subr.bf16.mxu0 0
    %430 = vmatpush1.bf16.xpose.msra.mxu0 0
    %431 = vmatprep.subr.bf16.mxu0 0
    %432 = vmatpush1.bf16.xpose.msra.mxu0 0
    %433 = vmatprep.subr.bf16.mxu0 0
    %434 = vmatpush1.bf16.xpose.msra.mxu0 0
    %435 = vmatprep.subr.bf16.mxu0 0
    %436 = vmatpush1.bf16.xpose.msra.mxu0 0
    %437 = vmatprep.subr.bf16.mxu0 0
    %438 = vmatpush1.bf16.xpose.msra.mxu0 0
    %439 = vmatprep.subr.bf16.mxu0 0
    %440 = vmatpush1.bf16.xpose.msra.mxu0 0
    %441 = vmatprep.mubr.bf16.mxu0 0
    %442 = vmatmul.mubr.bf16.gmra.mrb[0].mxu0 %v402
    %v443 = vpop.f32.mrb[0].mxu0
    %v444 = vadd.f32 %v407, %v443
    %v445 = vpop.f32.mrb[0].mxu0
    %v446 = vpop.f32.mrb[0].mxu0
    %v447 = vpop.f32.mrb[0].mxu0
    %448 = vdwg.mxu0
    %449 = vst [vmem:[#allocation2] sm:$0xff] %v444
    // Predicated region
    $region30: #{tpu_custom_call.1} parent=1 // pred_check
      _
    $region31: #{tpu_custom_call.1} parent=1 // pred_check_branch
      %451 = sbr.rel (0) target = $region33
    $region32: #{tpu_custom_call.1} parent=1 // pred_region
      %s453 = ssub.s32 128, 128
      %454 = vsyncadd [#allocation3], %s453
      %s456 = sshll.u32 [#allocation2], 4
      %s457 = int_to_ptr.vmem [resolvable:$true] %s456
      %459 = dma.vmem_to_hbm [thread:$0]  %s457, 128, %s7, [#allocation3]
    $region33: #{tpu_custom_call.1} parent=1 // pred_fallthru
      _
    // Predicated region
    $region34: #{tpu_custom_call.1} parent=1 // pred_check
      _
    $region35: #{tpu_custom_call.1} parent=1 // pred_check_branch
      %461 = sbr.rel (0) target = $region37
    $region36: #{tpu_custom_call.1} parent=1 // pred_region
      %462 = dma.done [#allocation3], 128
    $region37: #{tpu_custom_call.1} parent=1 // pred_fallthru
      _
    %463 = vsyncpa [#allocation3], 1

</llo_original>
